<compile_context>
chip_gen: v7x
topology: tpu7x:2x2x1
jax: 0.10.0
libtpu: 0.0.40
codegen_flags: <defaults>
</compile_context>

<pallas_src>
import math

import jax
import jax.numpy as jnp
from jax.experimental import pallas as pl
from jax.experimental.pallas import tpu as pltpu


def _round_up(x: int, m: int) -> int:
    return (x + m - 1) // m * m


def _physical_vmem_bytes() -> int:
    """Physical VMEM per core (v5e/v6e: 128 MiB, v7x: 64 MiB); safe fallback."""
    try:
        cap = getattr(pltpu.get_tpu_info(), "vmem_capacity_bytes", None)
        if cap:
            return int(cap)
    except Exception:
        pass
    return 64 * 1024 * 1024  # conservative (v7x-sized) fallback


_BUFFERED = getattr(pl, "Buffered", None)
_HEADROOM = 2 * 1024 * 1024


def _spec(shape, index_map, mode=None):
    if mode is None:
        return pl.BlockSpec(shape, index_map)
    return pl.BlockSpec(shape, index_map, pipeline_mode=mode)


# ----------------------------- kernels ------------------------------------ #

def ffn_kernel_resident(x_ref, w1_ref, b1_ref, w2_ref, b2_ref, o_ref):
    # Linear1 on the MXU (f32 accumulation); bias + ReLU on the VPU, with the
    # hidden activation materialized directly in the weight dtype.
    h = jnp.maximum(
        jnp.dot(x_ref[...], w1_ref[...], preferred_element_type=jnp.float32)
        + b1_ref[...], 0.0).astype(w2_ref.dtype)
    o_ref[...] = (jnp.dot(h, w2_ref[...], preferred_element_type=jnp.float32)
                  + b2_ref[...]).astype(o_ref.dtype)


def ffn_kernel_hid_tiled(x_ref, w1_ref, b1_ref, w2_ref, b2_ref, o_ref, acc_ref):
    # d_hid reduction axis is the trailing grid axis; accumulate y in f32.
    h_idx = pl.program_id(1)

    @pl.when(h_idx == 0)
    def _():
        acc_ref[...] = jnp.zeros_like(acc_ref)

    h = jnp.maximum(
        jnp.dot(x_ref[...], w1_ref[...], preferred_element_type=jnp.float32)
        + b1_ref[...], 0.0).astype(w2_ref.dtype)
    acc_ref[...] += jnp.dot(h, w2_ref[...], preferred_element_type=jnp.float32)

    @pl.when(h_idx == pl.num_programs(1) - 1)
    def _():
        o_ref[...] = (acc_ref[...] + b2_ref[...]).astype(o_ref.dtype)


# ----------------------------- wrapper ------------------------------------ #

def ffn_pallas(x, w1, b1, w2, b2, *, block_m: int = 1024, hid_block=None):
    """x: [..., d_in]; w1: [d_in, d_hid]; b1: [d_hid]; w2: [d_hid, d_out]; b2: [d_out]."""
    d_in = x.shape[-1]
    d_hid, d_out = w1.shape[1], w2.shape[1]
    assert w1.shape[0] == d_in and w2.shape[0] == d_hid

    lead = x.shape[:-1]
    m = int(math.prod(lead)) if lead else 1
    x2d = x.reshape(m, d_in)                       # no HBM padding of M / features

    # Biases stay f32 so they are added into the f32 accumulator.
    b1r = b1.astype(jnp.float32).reshape(1, d_hid)
    b2r = b2.astype(jnp.float32).reshape(1, d_out)

    x_it = jnp.dtype(x.dtype).itemsize
    w_it = jnp.dtype(w1.dtype).itemsize
    o_it = x_it

    phys = _physical_vmem_bytes()
    budget = int(phys * 0.65)
    vmem_cap = int(phys * 0.9)

    cost = pl.CostEstimate(
        flops=2 * m * d_hid * (d_in + d_out),
        transcendentals=0,
        bytes_accessed=(m * (d_in * x_it + d_out * o_it)
                        + (d_in * d_hid + d_hid * d_out) * w_it
                        + (d_hid + d_out) * 4),
    )

    # Per-row VMEM cost of a row tile: double-buffered x/y + the hidden
    # activation (f32 accumulator + weight-dtype copy).
    per_row_bytes = 2 * d_in * x_it + 2 * d_out * o_it + d_hid * (4 + w_it)
    resident_w_bytes = (d_in * d_hid + d_hid * d_out) * w_it + (d_hid + d_out) * 4

    use_resident = (hid_block is None
                    and resident_w_bytes + 8 * per_row_bytes + _HEADROOM <= budget)

    def _choose_tm(avail_bytes):
        tm = max(8, min(block_m, (avail_bytes // max(per_row_bytes, 1)) // 8 * 8))
        if m > 8:
            # Keep at least 2 grid steps so both TensorCores (v7x) get work and
            # the x/y DMA pipeline has something to overlap.
            tm = min(tm, _round_up(pl.cdiv(m, 2), 8))
        return max(8, tm)

    if use_resident:
        # --------- weights fully resident in VMEM, row-tiled grid ---------- #
        tm = _choose_tm(budget - _HEADROOM - resident_w_bytes)
        grid_m = pl.cdiv(m, tm)

        def run(resident_mode, resident_bufs):
            footprint = (2 * tm * d_in * x_it + 2 * tm * d_out * o_it
                         + resident_bufs * resident_w_bytes
                         + tm * d_hid * (4 + w_it)
                         + tm * d_out * 4)
            vmem_limit = min(max(int(footprint) + _HEADROOM, 32 * 1024 * 1024),
                             vmem_cap)
            return pl.pallas_call(
                ffn_kernel_resident,
                out_shape=jax.ShapeDtypeStruct((m, d_out), x.dtype),
                grid=(grid_m,),
                in_specs=[
                    _spec((tm, d_in), lambda i: (i, 0)),                 # x tile (pipelined)
                    _spec((d_in, d_hid), lambda i: (0, 0), resident_mode),
                    _spec((1, d_hid), lambda i: (0, 0), resident_mode),
                    _spec((d_hid, d_out), lambda i: (0, 0), resident_mode),
                    _spec((1, d_out), lambda i: (0, 0), resident_mode),
                ],
                out_specs=pl.BlockSpec((tm, d_out), lambda i: (i, 0)),
                compiler_params=pltpu.CompilerParams(
                    dimension_semantics=("parallel",),
                    vmem_limit_bytes=vmem_limit,
                ),
                cost_estimate=cost,
            )(x2d, w1, b1r, w2, b2r)

        if _BUFFERED is not None:
            try:
                out2d = run(_BUFFERED(1), 1)     # single-buffer the constant blocks
            except Exception:
                out2d = run(None, 2)             # fallback: default double-buffering
        else:
            out2d = run(None, 2)
        return out2d.reshape(*lead, d_out)

    # ------------- large-d_hid path: stream weight chunks, reduce ---------- #
    tm = min(_choose_tm(budget // 2), 512)
    grid_m = pl.cdiv(m, tm)

    fixed = (2 * tm * d_in * x_it + 2 * tm * d_out * o_it
             + tm * d_out * 4                      # f32 accumulator scratch
             + 2 * d_out * 4 + _HEADROOM)
    per_th = 2 * (d_in + d_out) * w_it + 2 * 4 + tm * (4 + w_it)
    th = (budget - fixed) // max(per_th, 1) // 128 * 128
    th = int(max(128, min(th, _round_up(d_hid, 128))))
    if hid_block is not None:
        th = int(hid_block)
    d_hid_p = _round_up(d_hid, th)
    grid_h = d_hid_p // th

    pad_h = d_hid_p - d_hid
    # TODO(synk): hoist this one-off zero-padding of the weights to
    # parameter-init time (it costs an extra HBM pass per call here).
    w1_p = jnp.pad(w1, ((0, 0), (0, pad_h))) if pad_h else w1
    w2_p = jnp.pad(w2, ((0, pad_h), (0, 0))) if pad_h else w2
    b1_p = jnp.pad(b1r, ((0, 0), (0, pad_h))) if pad_h else b1r

    footprint = (2 * tm * d_in * x_it + 2 * tm * d_out * o_it
                 + tm * d_out * 4
                 + 2 * (d_in * th * w_it + th * 4 + th * d_out * w_it)
                 + 2 * d_out * 4
                 + tm * th * (4 + w_it))
    vmem_limit = min(max(int(footprint) + _HEADROOM, 32 * 1024 * 1024), vmem_cap)

    out2d = pl.pallas_call(
        ffn_kernel_hid_tiled,
        out_shape=jax.ShapeDtypeStruct((m, d_out), x.dtype),
        grid=(grid_m, grid_h),
        in_specs=[
            pl.BlockSpec((tm, d_in), lambda i, h: (i, 0)),     # x tile (kept across h)
            pl.BlockSpec((d_in, th), lambda i, h: (0, h)),     # w1 chunk (pipelined)
            pl.BlockSpec((1, th), lambda i, h: (0, h)),        # b1 chunk
            pl.BlockSpec((th, d_out), lambda i, h: (h, 0)),    # w2 chunk (pipelined)
            pl.BlockSpec((1, d_out), lambda i, h: (0, 0)),     # b2 resident
        ],
        out_specs=pl.BlockSpec((tm, d_out), lambda i, h: (i, 0)),
        scratch_shapes=[pltpu.VMEM((tm, d_out), jnp.float32)],
        compiler_params=pltpu.CompilerParams(
            dimension_semantics=("parallel", "arbitrary"),
            vmem_limit_bytes=vmem_limit,
        ),
        cost_estimate=cost,
    )(x2d, w1_p, b1_p, w2_p, b2r)
    return out2d.reshape(*lead, d_out)


def init_ffn_params(key, d_in=16, d_out=16, dtype=jnp.float32):
    """Deterministic init matching nn.Linear shapes (stored pre-transposed [in, out]).

    Note: the module's second Linear has fan-in == d_out (its input is the first
    layer's output), so 1/sqrt(d_out) is the correct bound here.
    """
    k1, k2, k3, k4 = jax.random.split(key, 4)
    bound1 = 1.0 / jnp.sqrt(d_in)
    bound2 = 1.0 / jnp.sqrt(d_out)
    w1 = jax.random.uniform(k1, (d_in, d_out), dtype, -bound1, bound1)
    b1 = jax.random.uniform(k2, (d_out,), dtype, -bound1, bound1)
    w2 = jax.random.uniform(k3, (d_out, d_out), dtype, -bound2, bound2)
    b2 = jax.random.uniform(k4, (d_out,), dtype, -bound2, bound2)
    return w1, b1, w2, b2


if __name__ == "__main__":
    key = jax.random.PRNGKey(0)
    kx, kp = jax.random.split(key)

    # Module defaults: Linear(16, 16) -> ReLU -> Linear(16, 16); vecs: [2, 8, 16].
    d_in = d_out = 16
    x = jax.random.normal(kx, (2, 8, d_in), dtype=jnp.float32)
    w1, b1, w2, b2 = init_ffn_params(kp, d_in, d_out)

    y = ffn_pallas(x, w1, b1, w2, b2)
    jax.block_until_ready(y)

    ref = jnp.maximum(x @ w1 + b1, 0.0) @ w2 + b2
    assert y.shape == (2, 8, d_out)
    assert jnp.allclose(y, ref, atol=1e-5), "mismatch vs reference (resident path)"

    # Also exercise the d_hid-tiled reduction path (used when weights would
    # exceed the VMEM budget) with a small forced hid_block.
    kx2, kw1, kb1, kw2, kb2 = jax.random.split(key, 5)
    di, dh, do = 16, 256, 32
    x2 = jax.random.normal(kx2, (3, 24, di), dtype=jnp.float32)
    w1b = 0.1 * jax.random.normal(kw1, (di, dh), dtype=jnp.float32)
    b1b = 0.1 * jax.random.normal(kb1, (dh,), dtype=jnp.float32)
    w2b = 0.1 * jax.random.normal(kw2, (dh, do), dtype=jnp.float32)
    b2b = 0.1 * jax.random.normal(kb2, (do,), dtype=jnp.float32)
    y2 = ffn_pallas(x2, w1b, b1b, w2b, b2b, hid_block=128)
    jax.block_until_ready(y2)
    ref2 = jnp.maximum(x2 @ w1b + b1b, 0.0) @ w2b + b2b
    assert jnp.allclose(y2, ref2, atol=1e-4, rtol=1e-4), "mismatch (hid-tiled path)"

    print("KERNEL_OK")
</pallas_src>

<mosaic_0001>
module attributes {stable_mosaic.version = 11 : i64} {
  func.func @ffn_kernel_resident(%arg0: i32, %arg1: memref<8x16xf32, #tpu.memory_space<vmem>>, %arg2: memref<16x16xf32, #tpu.memory_space<vmem>>, %arg3: memref<1x16xf32, #tpu.memory_space<vmem>>, %arg4: memref<16x16xf32, #tpu.memory_space<vmem>>, %arg5: memref<1x16xf32, #tpu.memory_space<vmem>>, %arg6: memref<8x16xf32, #tpu.memory_space<vmem>>) attributes {dimension_semantics = [#tpu.dimension_semantics<parallel>], iteration_bounds = array<i64: 2>, scalar_prefetch = 0 : i64, scratch_operands = 0 : i64, tpu.core_type = #tpu.core_type<tc>, window_params = [{transform_indices = @transform_0, window_bounds = array<i64: 8, 16>}, {pipeline_mode = #tpu.pipeline_mode<synchronous>, transform_indices = @transform_1, window_bounds = array<i64: 16, 16>}, {pipeline_mode = #tpu.pipeline_mode<synchronous>, transform_indices = @transform_2, window_bounds = array<i64: 1, 16>}, {pipeline_mode = #tpu.pipeline_mode<synchronous>, transform_indices = @transform_3, window_bounds = array<i64: 16, 16>}, {pipeline_mode = #tpu.pipeline_mode<synchronous>, transform_indices = @transform_4, window_bounds = array<i64: 1, 16>}, {transform_indices = @transform_5, window_bounds = array<i64: 8, 16>}]} {
    %c0 = arith.constant 0 : index
    %c0_0 = arith.constant 0 : index
    %0 = vector.load %arg1[%c0, %c0_0] : memref<8x16xf32, #tpu.memory_space<vmem>>, vector<8x16xf32>
    %c0_1 = arith.constant 0 : index
    %c0_2 = arith.constant 0 : index
    %1 = vector.load %arg2[%c0_1, %c0_2] : memref<16x16xf32, #tpu.memory_space<vmem>>, vector<16x16xf32>
    %cst = arith.constant dense<0.000000e+00> : vector<8x16xf32>
    %2 = tpu.matmul %0, %1, %cst {dimension_numbers = #tpu.dot_dimension_numbers<[1], [0], [0], [1], [0, 0, 1, 1], [], []>} : vector<8x16xf32>, vector<16x16xf32>, vector<8x16xf32> -> vector<8x16xf32>
    %c0_3 = arith.constant 0 : index
    %c0_4 = arith.constant 0 : index
    %3 = vector.load %arg3[%c0_3, %c0_4] : memref<1x16xf32, #tpu.memory_space<vmem>>, vector<1x16xf32>
    %4 = vector.broadcast %3 : vector<1x16xf32> to vector<8x16xf32>
    %5 = arith.addf %2, %4 : vector<8x16xf32>
    %cst_5 = arith.constant 0.000000e+00 : f32
    %6 = vector.broadcast %cst_5 : f32 to vector<8x16xf32>
    %7 = arith.maximumf %5, %6 : vector<8x16xf32>
    %c0_6 = arith.constant 0 : index
    %c0_7 = arith.constant 0 : index
    %8 = vector.load %arg4[%c0_6, %c0_7] : memref<16x16xf32, #tpu.memory_space<vmem>>, vector<16x16xf32>
    %cst_8 = arith.constant dense<0.000000e+00> : vector<8x16xf32>
    %9 = tpu.matmul %7, %8, %cst_8 {dimension_numbers = #tpu.dot_dimension_numbers<[1], [0], [0], [1], [0, 0, 1, 1], [], []>} : vector<8x16xf32>, vector<16x16xf32>, vector<8x16xf32> -> vector<8x16xf32>
    %c0_9 = arith.constant 0 : index
    %c0_10 = arith.constant 0 : index
    %10 = vector.load %arg5[%c0_9, %c0_10] : memref<1x16xf32, #tpu.memory_space<vmem>>, vector<1x16xf32>
    %11 = vector.broadcast %10 : vector<1x16xf32> to vector<8x16xf32>
    %12 = arith.addf %9, %11 : vector<8x16xf32>
    %c0_11 = arith.constant 0 : index
    %c0_12 = arith.constant 0 : index
    %13 = vector.load %arg6[%c0_11, %c0_12] : memref<8x16xf32, #tpu.memory_space<vmem>>, vector<8x16xf32>
    tpu.vector_store %arg6[%c0_11, %c0_12], %12 {strides = array<i32>} : memref<8x16xf32, #tpu.memory_space<vmem>>, vector<8x16xf32>,
    return
  }
  func.func @transform_0(%arg0: i32) -> (i32, i32) {
    %c0_i32 = arith.constant 0 : i32
    %c0_i32_0 = arith.constant 0 : i32
    return %arg0, %c0_i32 : i32, i32
  }
  func.func @transform_1(%arg0: i32) -> (i32, i32) {
    %c0_i32 = arith.constant 0 : i32
    %c0_i32_0 = arith.constant 0 : i32
    %c0_i32_1 = arith.constant 0 : i32
    return %c0_i32, %c0_i32_0 : i32, i32
  }
  func.func @transform_2(%arg0: i32) -> (i32, i32) {
    %c0_i32 = arith.constant 0 : i32
    %c0_i32_0 = arith.constant 0 : i32
    %c0_i32_1 = arith.constant 0 : i32
    return %c0_i32, %c0_i32_0 : i32, i32
  }
  func.func @transform_3(%arg0: i32) -> (i32, i32) {
    %c0_i32 = arith.constant 0 : i32
    %c0_i32_0 = arith.constant 0 : i32
    %c0_i32_1 = arith.constant 0 : i32
    return %c0_i32, %c0_i32_0 : i32, i32
  }
  func.func @transform_4(%arg0: i32) -> (i32, i32) {
    %c0_i32 = arith.constant 0 : i32
    %c0_i32_0 = arith.constant 0 : i32
    %c0_i32_1 = arith.constant 0 : i32
    return %c0_i32, %c0_i32_0 : i32, i32
  }
  func.func @transform_5(%arg0: i32) -> (i32, i32) {
    %c0_i32 = arith.constant 0 : i32
    %c0_i32_0 = arith.constant 0 : i32
    return %arg0, %c0_i32 : i32, i32
  }
}

module attributes {stable_mosaic.version = 11 : i64} {
  func.func @ffn_kernel_resident(%arg0: i32, %arg1: memref<8x16xf32, #tpu.memory_space<vmem>>, %arg2: memref<16x16xf32, #tpu.memory_space<vmem>>, %arg3: memref<1x16xf32, #tpu.memory_space<vmem>>, %arg4: memref<16x16xf32, #tpu.memory_space<vmem>>, %arg5: memref<1x16xf32, #tpu.memory_space<vmem>>, %arg6: memref<8x16xf32, #tpu.memory_space<vmem>>) attributes {dimension_semantics = [#tpu.dimension_semantics<parallel>], iteration_bounds = array<i64: 2>, scalar_prefetch = 0 : i64, scratch_operands = 0 : i64, tpu.core_type = #tpu.core_type<tc>, window_params = [{transform_indices = @transform_0, window_bounds = array<i64: 8, 16>}, {pipeline_mode = #tpu.pipeline_mode<synchronous>, transform_indices = @transform_1, window_bounds = array<i64: 16, 16>}, {pipeline_mode = #tpu.pipeline_mode<synchronous>, transform_indices = @transform_2, window_bounds = array<i64: 1, 16>}, {pipeline_mode = #tpu.pipeline_mode<synchronous>, transform_indices = @transform_3, window_bounds = array<i64: 16, 16>}, {pipeline_mode = #tpu.pipeline_mode<synchronous>, transform_indices = @transform_4, window_bounds = array<i64: 1, 16>}, {transform_indices = @transform_5, window_bounds = array<i64: 8, 16>}]} {
    %c0 = arith.constant 0 : index
    %c0_0 = arith.constant 0 : index
    %0 = vector.load %arg1[%c0, %c0_0] : memref<8x16xf32, #tpu.memory_space<vmem>>, vector<8x16xf32>
    %c0_1 = arith.constant 0 : index
    %c0_2 = arith.constant 0 : index
    %1 = vector.load %arg2[%c0_1, %c0_2] : memref<16x16xf32, #tpu.memory_space<vmem>>, vector<16x16xf32>
    %cst = arith.constant dense<0.000000e+00> : vector<8x16xf32>
    %2 = tpu.matmul %0, %1, %cst {dimension_numbers = #tpu.dot_dimension_numbers<[1], [0], [0], [1], [0, 0, 1, 1], [], []>} : vector<8x16xf32>, vector<16x16xf32>, vector<8x16xf32> -> vector<8x16xf32>
    %c0_3 = arith.constant 0 : index
    %c0_4 = arith.constant 0 : index
    %3 = vector.load %arg3[%c0_3, %c0_4] : memref<1x16xf32, #tpu.memory_space<vmem>>, vector<1x16xf32>
    %4 = vector.broadcast %3 : vector<1x16xf32> to vector<8x16xf32>
    %5 = arith.addf %2, %4 : vector<8x16xf32>
    %cst_5 = arith.constant 0.000000e+00 : f32
    %6 = vector.broadcast %cst_5 : f32 to vector<8x16xf32>
    %7 = arith.maximumf %5, %6 : vector<8x16xf32>
    %c0_6 = arith.constant 0 : index
    %c0_7 = arith.constant 0 : index
    %8 = vector.load %arg4[%c0_6, %c0_7] : memref<16x16xf32, #tpu.memory_space<vmem>>, vector<16x16xf32>
    %cst_8 = arith.constant dense<0.000000e+00> : vector<8x16xf32>
    %9 = tpu.matmul %7, %8, %cst_8 {dimension_numbers = #tpu.dot_dimension_numbers<[1], [0], [0], [1], [0, 0, 1, 1], [], []>} : vector<8x16xf32>, vector<16x16xf32>, vector<8x16xf32> -> vector<8x16xf32>
    %c0_9 = arith.constant 0 : index
    %c0_10 = arith.constant 0 : index
    %10 = vector.load %arg5[%c0_9, %c0_10] : memref<1x16xf32, #tpu.memory_space<vmem>>, vector<1x16xf32>
    %11 = vector.broadcast %10 : vector<1x16xf32> to vector<8x16xf32>
    %12 = arith.addf %9, %11 : vector<8x16xf32>
    %c0_11 = arith.constant 0 : index
    %c0_12 = arith.constant 0 : index
    %13 = vector.load %arg6[%c0_11, %c0_12] : memref<8x16xf32, #tpu.memory_space<vmem>>, vector<8x16xf32>
    tpu.vector_store %arg6[%c0_11, %c0_12], %12 {strides = array<i32>} : memref<8x16xf32, #tpu.memory_space<vmem>>, vector<8x16xf32>,
    return
  }
  func.func @transform_0(%arg0: i32) -> (i32, i32) {
    %c0_i32 = arith.constant 0 : i32
    %c0_i32_0 = arith.constant 0 : i32
    return %arg0, %c0_i32 : i32, i32
  }
  func.func @transform_1(%arg0: i32) -> (i32, i32) {
    %c0_i32 = arith.constant 0 : i32
    %c0_i32_0 = arith.constant 0 : i32
    %c0_i32_1 = arith.constant 0 : i32
    return %c0_i32, %c0_i32_0 : i32, i32
  }
  func.func @transform_2(%arg0: i32) -> (i32, i32) {
    %c0_i32 = arith.constant 0 : i32
    %c0_i32_0 = arith.constant 0 : i32
    %c0_i32_1 = arith.constant 0 : i32
    return %c0_i32, %c0_i32_0 : i32, i32
  }
  func.func @transform_3(%arg0: i32) -> (i32, i32) {
    %c0_i32 = arith.constant 0 : i32
    %c0_i32_0 = arith.constant 0 : i32
    %c0_i32_1 = arith.constant 0 : i32
    return %c0_i32, %c0_i32_0 : i32, i32
  }
  func.func @transform_4(%arg0: i32) -> (i32, i32) {
    %c0_i32 = arith.constant 0 : i32
    %c0_i32_0 = arith.constant 0 : i32
    %c0_i32_1 = arith.constant 0 : i32
    return %c0_i32, %c0_i32_0 : i32, i32
  }
  func.func @transform_5(%arg0: i32) -> (i32, i32) {
    %c0_i32 = arith.constant 0 : i32
    %c0_i32_0 = arith.constant 0 : i32
    return %arg0, %c0_i32 : i32, i32
  }
}

</mosaic_0001>

<llo_original>
// kernel: tpu_custom_call.1
$region0: #{tpu_custom_call.1}
  #allocation0 [shape = 'u32[]', space=smem, size = 0x4, offset = 0x4, fixed_abs, tag = 'smem constant byte address 0x4 - core index']
  #allocation1 [shape = 'u32[144,128]{1,0:T(1,128)}', space=vmem, size = 0x12000, scoped, tag = 'internal scratch']
  %s0 = inlined_call_operand.hbm [shape: f32[16,16], index: 0, kind: input, shape index: {}]
  %s1 = inlined_call_operand.hbm [shape: f32[16,16], index: 1, kind: input, shape index: {}]
  %s2 = inlined_call_operand.vmem [shape: f32[1,16], index: 2, kind: input, shape index: {}]
  %s3 = inlined_call_operand.hbm [shape: f32[16,16], index: 3, kind: input, shape index: {}]
  %s4 = inlined_call_operand.vmem [shape: f32[1,16], index: 4, kind: input, shape index: {}]
  %s5 = inlined_call_operand.hbm [shape: f32[16,16], index: 5, kind: output, shape index: {}]
  %s6 = sld [smem:[#allocation0]]
  $region65: #{tpu_custom_call.1} parent=0
    _
  %s8 = ssub.s32 1, %s6
  %s9 = scalar_select 0, %s8, %s6
  $region1: #{tpu_custom_call.1} parent=0
    #allocation2 [shape = 'u8[8192]{0}', space=vmem, size = 0x2000, scoped, tag = 'input window, operand 0']
    #allocation3 [shape = 's32[2]{0}', space=sflag, size = 0x8, scoped, tag = 'scoped memory for tpu_custom_call.1']
    #allocation4 [shape = 's32[2]{0}', space=sflag, size = 0x8, scoped, tag = 'scoped memory for tpu_custom_call.1']
    #allocation5 [shape = 'u8[8192]{0}', space=vmem, size = 0x2000, scoped, tag = 'input window, operand 1, single buffered']
    #allocation6 [shape = 's32[1]{0}', space=sflag, size = 0x4, scoped, tag = 'scoped memory for tpu_custom_call.1']
    #allocation7 [shape = 'u8[8192]{0}', space=vmem, size = 0x2000, scoped, tag = 'input window, operand 3, single buffered']
    #allocation8 [shape = 'u8[8192]{0}', space=vmem, size = 0x2000, scoped, tag = 'output window, operand 0']
    %10 = vsyncpa [#allocation3], 0
    %s11 = scalar_lea.sflag [#allocation3], 1
    %12 = vsyncpa %s11, 0
    %13 = vsyncpa [#allocation6], 0
    %14 = vsyncpa [#allocation4], 0
    %s15 = scalar_lea.sflag [#allocation4], 1
    %16 = vsyncpa %s15, 0
    loop: start=0, step=1, limit=4
    $region2: #{tpu_custom_call.1} parent=1 // loop_pre_header
      _
    $region3: #{tpu_custom_call.1} parent=1 // loop_header
      %s18 = sphi 0, %s22
      %p19 = scmp.ge.s32.totalorder %s18, 4
      %s28 = sphi 0, %s30
      %s31 = sphi 0, %s28
      %s32 = sphi 0, %s31
      %s48 = sphi 0, %s32
      %s52 = sphi 0, %s52
      %s54 = sphi 0, %s52
      %s55 = sphi 0, %s54
      %s69 = sphi 0, %s55
      %s73 = sphi 0, %s73
      %s75 = sphi 0, %s73
      %s76 = sphi 0, %s75
      %s90 = sphi 0, %s76
      %s94 = sphi 0, %s94
      %s96 = sphi 0, %s94
      %s97 = sphi 0, %s96
      %s111 = sphi 0, %s97
      %s115 = sphi 0, %s115
      %s117 = sphi 0, %s115
      %s118 = sphi 0, %s117
      %s132 = sphi 0, %s118
      %s138 = sphi 0, %s140
      %s141 = sphi 0, %s138
      %s142 = sphi 0, %s141
      %s158 = sphi 0, %s142
    $region4: #{tpu_custom_call.1} parent=1 // loop_header_branch
      %21 = sbr.rel (%p19) target = $region8
    $region5: #{tpu_custom_call.1} parent=1 // loop_body
      %s23 = ssub.s32 %s18, 1
      %s24 = ssub.s32 %s18, 2
      %s25 = sadd.s32 %s18, 1
      %s26 = ssub.s32 %s18, %s25
      %p27 = scmp.eq.s32.totalorder %s26, 0
      %s29 = sadd.s32 %s28, 1
      %s30 = scalar_select %p27, %s28, %s29
      %p33 = pneg %p27
      %p34 = scmp.eq.s32.totalorder %s18, 1
      %p35 = por %p33, %p34
      %p36 = scmp.ne.s32.totalorder %s28, %s31
      %p37 = scmp.eq.s32.totalorder %s18, 0
      %p38 = por %p36, %p37
      %p39 = scmp.ne.s32.totalorder %s28, %s31
      %p40 = scmp.eq.s32.totalorder %s23, 1
      %p41 = por %p39, %p40
      %p42 = scmp.ne.s32.totalorder %s31, %s32
      %p43 = scmp.eq.s32.totalorder %s23, 0
      %p44 = por %p42, %p43
      %p45 = scmp.ne.s32.totalorder %s31, %s32
      %p46 = scmp.eq.s32.totalorder %s24, 1
      %p47 = por %p45, %p46
      %p49 = scmp.ne.s32.totalorder %s32, %s48
      %p50 = scmp.eq.s32.totalorder %s24, 0
      %p51 = por %p49, %p50
      %s53 = sadd.s32 %s52, 1
      %p56 = scmp.eq.s32.totalorder %s18, 1
      %p57 = scmp.ne.s32.totalorder %s52, %s54
      %p58 = scmp.eq.s32.totalorder %s18, 0
      %p59 = por %p57, %p58
      %p60 = scmp.ne.s32.totalorder %s52, %s54
      %p61 = scmp.eq.s32.totalorder %s23, 1
      %p62 = por %p60, %p61
      %p63 = scmp.ne.s32.totalorder %s54, %s55
      %p64 = scmp.eq.s32.totalorder %s23, 0
      %p65 = por %p63, %p64
      %p66 = scmp.ne.s32.totalorder %s54, %s55
      %p67 = scmp.eq.s32.totalorder %s24, 1
      %p68 = por %p66, %p67
      %p70 = scmp.ne.s32.totalorder %s55, %s69
      %p71 = scmp.eq.s32.totalorder %s24, 0
      %p72 = por %p70, %p71
      %s74 = sadd.s32 %s73, 1
      %p77 = scmp.eq.s32.totalorder %s18, 1
      %p78 = scmp.ne.s32.totalorder %s73, %s75
      %p79 = scmp.eq.s32.totalorder %s18, 0
      %p80 = por %p78, %p79
      %p81 = scmp.ne.s32.totalorder %s73, %s75
      %p82 = scmp.eq.s32.totalorder %s23, 1
      %p83 = por %p81, %p82
      %p84 = scmp.ne.s32.totalorder %s75, %s76
      %p85 = scmp.eq.s32.totalorder %s23, 0
      %p86 = por %p84, %p85
      %p87 = scmp.ne.s32.totalorder %s75, %s76
      %p88 = scmp.eq.s32.totalorder %s24, 1
      %p89 = por %p87, %p88
      %p91 = scmp.ne.s32.totalorder %s76, %s90
      %p92 = scmp.eq.s32.totalorder %s24, 0
      %p93 = por %p91, %p92
      %s95 = sadd.s32 %s94, 1
      %p98 = scmp.eq.s32.totalorder %s18, 1
      %p99 = scmp.ne.s32.totalorder %s94, %s96
      %p100 = scmp.eq.s32.totalorder %s18, 0
      %p101 = por %p99, %p100
      %p102 = scmp.ne.s32.totalorder %s94, %s96
      %p103 = scmp.eq.s32.totalorder %s23, 1
      %p104 = por %p102, %p103
      %p105 = scmp.ne.s32.totalorder %s96, %s97
      %p106 = scmp.eq.s32.totalorder %s23, 0
      %p107 = por %p105, %p106
      %p108 = scmp.ne.s32.totalorder %s96, %s97
      %p109 = scmp.eq.s32.totalorder %s24, 1
      %p110 = por %p108, %p109
      %p112 = scmp.ne.s32.totalorder %s97, %s111
      %p113 = scmp.eq.s32.totalorder %s24, 0
      %p114 = por %p112, %p113
      %s116 = sadd.s32 %s115, 1
      %p119 = scmp.eq.s32.totalorder %s18, 1
      %p120 = scmp.ne.s32.totalorder %s115, %s117
      %p121 = scmp.eq.s32.totalorder %s18, 0
      %p122 = por %p120, %p121
      %p123 = scmp.ne.s32.totalorder %s115, %s117
      %p124 = scmp.eq.s32.totalorder %s23, 1
      %p125 = por %p123, %p124
      %p126 = scmp.ne.s32.totalorder %s117, %s118
      %p127 = scmp.eq.s32.totalorder %s23, 0
      %p128 = por %p126, %p127
      %p129 = scmp.ne.s32.totalorder %s117, %s118
      %p130 = scmp.eq.s32.totalorder %s24, 1
      %p131 = por %p129, %p130
      %p133 = scmp.ne.s32.totalorder %s118, %s132
      %p134 = scmp.eq.s32.totalorder %s24, 0
      %p135 = por %p133, %p134
      %s136 = ssub.s32 %s18, %s25
      %p137 = scmp.eq.s32.totalorder %s136, 0
      %s139 = sadd.s32 %s138, 1
      %s140 = scalar_select %p137, %s138, %s139
      %p143 = pneg %p137
      %p144 = scmp.eq.s32.totalorder %s18, 1
      %p145 = por %p143, %p144
      %p146 = scmp.ne.s32.totalorder %s138, %s141
      %p147 = scmp.eq.s32.totalorder %s18, 0
      %p148 = por %p146, %p147
      %p149 = scmp.ne.s32.totalorder %s138, %s141
      %p150 = scmp.eq.s32.totalorder %s23, 1
      %p151 = por %p149, %p150
      %p152 = scmp.ne.s32.totalorder %s141, %s142
      %p153 = scmp.eq.s32.totalorder %s23, 0
      %p154 = por %p152, %p153
      %p155 = scmp.ne.s32.totalorder %s141, %s142
      %p156 = scmp.eq.s32.totalorder %s24, 1
      %p157 = por %p155, %p156
      %p159 = scmp.ne.s32.totalorder %s142, %s158
      %p160 = scmp.eq.s32.totalorder %s24, 0
      %p161 = por %p159, %p160
      %p162 = scmp.le.s32.totalorder 1, %s18
      %p163 = scmp.lt.s32.totalorder %s18, 3
      %p164 = pnand %p162, %p163
      %p165 = pneg %p164
      // Predicated region
      $region9: #{tpu_custom_call.1} parent=5 // pred_check
        _
      $region10: #{tpu_custom_call.1} parent=5 // pred_check_branch
        %167 = sbr.rel (%p164) target = $region12
      $region11: #{tpu_custom_call.1} parent=5 // pred_region
        %s168 = ssub.s32 %s18, 1
        // Predicated region
        $region13: #{tpu_custom_call.1} parent=11 // pred_check
          %p169 = pneg %p65
        $region14: #{tpu_custom_call.1} parent=11 // pred_check_branch
          %171 = sbr.rel (%p169) target = $region16
        $region15: #{tpu_custom_call.1} parent=11 // pred_region
          %s173 = ssub.s32 256, 256
          %174 = vsyncadd [#allocation6], %s173
          %s175 = sshll.u32 [#allocation5], 4
          %s176 = int_to_ptr.vmem [resolvable:$true] %s175
          %181 = dma.hbm_to_vmem [thread:$0]  %s1, 256, %s176, [#allocation6], 128, 128, 8
        $region16: #{tpu_custom_call.1} parent=11 // pred_fallthru
          _
        // Predicated region
        $region17: #{tpu_custom_call.1} parent=11 // pred_check
          %p182 = pneg %p86
        $region18: #{tpu_custom_call.1} parent=11 // pred_check_branch
          %184 = sbr.rel (%p182) target = $region20
        $region19: #{tpu_custom_call.1} parent=11 // pred_region
          _
        $region20: #{tpu_custom_call.1} parent=11 // pred_fallthru
          _
        // Predicated region
        $region21: #{tpu_custom_call.1} parent=11 // pred_check
          %p185 = pneg %p107
        $region22: #{tpu_custom_call.1} parent=11 // pred_check_branch
          %187 = sbr.rel (%p185) target = $region24
        $region23: #{tpu_custom_call.1} parent=11 // pred_region
          %s189 = ssub.s32 256, 256
          %190 = vsyncadd [#allocation6], %s189
          %s191 = sshll.u32 [#allocation7], 4
          %s192 = int_to_ptr.vmem [resolvable:$true] %s191
          %197 = dma.hbm_to_vmem [thread:$0]  %s3, 256, %s192, [#allocation6], 128, 128, 8
        $region24: #{tpu_custom_call.1} parent=11 // pred_fallthru
          _
        // Predicated region
        $region25: #{tpu_custom_call.1} parent=11 // pred_check
          %p198 = pneg %p128
        $region26: #{tpu_custom_call.1} parent=11 // pred_check_branch
          %200 = sbr.rel (%p198) target = $region28
        $region27: #{tpu_custom_call.1} parent=11 // pred_region
          _
        $region28: #{tpu_custom_call.1} parent=11 // pred_fallthru
          _
      $region12: #{tpu_custom_call.1} parent=5 // pred_fallthru
        _
      %p201 = scmp.lt.s32.totalorder %s18, 2
      // Predicated region
      $region29: #{tpu_custom_call.1} parent=5 // pred_check
        %p202 = pneg %p201
      $region30: #{tpu_custom_call.1} parent=5 // pred_check_branch
        %204 = sbr.rel (%p202) target = $region32
      $region31: #{tpu_custom_call.1} parent=5 // pred_region
        // Predicated region
        $region33: #{tpu_custom_call.1} parent=31 // pred_check
          %p205 = pneg %p38
        $region34: #{tpu_custom_call.1} parent=31 // pred_check_branch
          %207 = sbr.rel (%p205) target = $region36
        $region35: #{tpu_custom_call.1} parent=31 // pred_region
          %s208 = sand.u32 %s28, 1
          %s209 = scalar_lea.sflag [#allocation3], %s208
          %s210 = sand.u32 %s28, 1
          %s211 = smul.addr %s210, 8
          %s212 = scalar_lea.vmem [#allocation2], %s211
          %s214 = ssub.s32 128, 128
          %215 = vsyncadd %s209, %s214
          %s216 = smul.addr %s18, 128
          %s217 = scalar_lea.hbm %s0, %s216
          %s219 = sshll.u32 %s212, 4
          %s220 = int_to_ptr.vmem [resolvable:$true] %s219
          %222 = dma.hbm_to_vmem [thread:$0]  %s217, 128, %s220, %s209
        $region36: #{tpu_custom_call.1} parent=31 // pred_fallthru
          _
      $region32: #{tpu_custom_call.1} parent=5 // pred_fallthru
        _
      %p223 = scmp.le.s32.totalorder 1, %s18
      %p224 = scmp.lt.s32.totalorder %s18, 3
      %p225 = pnand %p223, %p224
      %p226 = pneg %p225
      // Predicated region
      $region37: #{tpu_custom_call.1} parent=5 // pred_check
        _
      $region38: #{tpu_custom_call.1} parent=5 // pred_check_branch
        %228 = sbr.rel (%p225) target = $region40
      $region39: #{tpu_custom_call.1} parent=5 // pred_region
        %s229 = ssub.s32 %s18, 1
        %s230 = sand.u32 %s31, 1
        %s231 = scalar_lea.sflag [#allocation3], %s230
        %s232 = sand.u32 %s31, 1
        %s233 = smul.addr %s232, 8
        %s234 = scalar_lea.vmem [#allocation2], %s233
        // Predicated region
        $region41: #{tpu_custom_call.1} parent=39 // pred_check
          %p235 = pneg %p44
        $region42: #{tpu_custom_call.1} parent=39 // pred_check_branch
          %237 = sbr.rel (%p235) target = $region44
        $region43: #{tpu_custom_call.1} parent=39 // pred_region
          %238 = dma.done %s231, 128
        $region44: #{tpu_custom_call.1} parent=39 // pred_fallthru
          _
        // Predicated region
        $region45: #{tpu_custom_call.1} parent=39 // pred_check
          %p239 = pneg %p65
        $region46: #{tpu_custom_call.1} parent=39 // pred_check_branch
          %241 = sbr.rel (%p239) target = $region48
        $region47: #{tpu_custom_call.1} parent=39 // pred_region
          %242 = dma.done [#allocation6], 256
        $region48: #{tpu_custom_call.1} parent=39 // pred_fallthru
          _
        // Predicated region
        $region49: #{tpu_custom_call.1} parent=39 // pred_check
          %p243 = pneg %p107
        $region50: #{tpu_custom_call.1} parent=39 // pred_check_branch
          %245 = sbr.rel (%p243) target = $region52
        $region51: #{tpu_custom_call.1} parent=39 // pred_region
          %246 = dma.done [#allocation6], 256
        $region52: #{tpu_custom_call.1} parent=39 // pred_fallthru
          _
        %s247 = sand.u32 %s31, 1
        %s248 = scalar_lea.sflag [#allocation3], %s247
        %s249 = sand.u32 %s31, 1
        %s250 = smul.addr %s249, 8
        %s251 = scalar_lea.vmem [#allocation2], %s250
        %p252 = pneg %p44
        %p253 = pneg %p41
        %p254 = pneg %p65
        %p255 = pneg %p62
        %p256 = pneg %p86
        %p257 = pneg %p83
        %p258 = pneg %p107
        %p259 = pneg %p104
        %p260 = pneg %p128
        %p261 = pneg %p125
        %p262 = pneg %p154
        %p263 = pneg %p151
        %s264 = sand.u32 %s141, 1
        %s265 = scalar_lea.sflag [#allocation4], %s264
        %s266 = sand.u32 %s141, 1
        %s267 = smul.addr %s266, 8
        %s268 = scalar_lea.vmem [#allocation8], %s267
        %v269 = vld [vmem:[%s234] sm:$0xff]
        %v270 = vld [vmem:[#allocation5] sm:$0xff]
        %v271 = vld [vmem:[#allocation5 + $0x8] sm:$0xff]
        %v272 = vld [vmem:[%s2] sm:$0x1]
        %v274 = vlaneseq
        %v275 = vshrl.u32 %v274, 7
        %v276 = vsub.s32 0, %v275
        %v277 = vrot.slane %v272, %v276
        %vm279 = vcmask 130048
        %v281 = vsel %vm279, %v269, 0
        %283 = vmatprep.subr.mxu0 0.0
        %284 = vmatpush1.msra.mxu0 %v270
        %285 = vmatprep.subr.mxu0 0.0
        %286 = vmatpush1.msra.mxu0 %v271
        %287 = vmatprep.subr.mxu0 0.0
        %288 = vmatpush1.msra.mxu0 0.0
        %289 = vmatprep.subr.mxu0 0.0
        %290 = vmatpush1.msra.mxu0 0.0
        %291 = vmatprep.subr.mxu0 0.0
        %292 = vmatpush1.msra.mxu0 0.0
        %293 = vmatprep.subr.mxu0 0.0
        %294 = vmatpush1.msra.mxu0 0.0
        %295 = vmatprep.subr.mxu0 0.0
        %296 = vmatpush1.msra.mxu0 0.0
        %297 = vmatprep.subr.mxu0 0.0
        %298 = vmatpush1.msra.mxu0 0.0
        %299 = vmatprep.subr.mxu0 0.0
        %300 = vmatpush1.msra.mxu0 0.0
        %301 = vmatprep.subr.mxu0 0.0
        %302 = vmatpush1.msra.mxu0 0.0
        %303 = vmatprep.subr.mxu0 0.0
        %304 = vmatpush1.msra.mxu0 0.0
        %305 = vmatprep.subr.mxu0 0.0
        %306 = vmatpush1.msra.mxu0 0.0
        %307 = vmatprep.subr.mxu0 0.0
        %308 = vmatpush1.msra.mxu0 0.0
        %309 = vmatprep.subr.mxu0 0.0
        %310 = vmatpush1.msra.mxu0 0.0
        %311 = vmatprep.subr.mxu0 0.0
        %312 = vmatpush1.msra.mxu0 0.0
        %313 = vmatprep.subr.mxu0 0.0
        %314 = vmatpush1.msra.mxu0 0.0
        %315 = vmatprep.subr.mxu0 0.0
        %316 = vmatpush1.msra.mxu0 0.0
        %317 = vmatprep.subr.mxu0 0.0
        %318 = vmatpush1.msra.mxu0 0.0
        %319 = vmatprep.subr.mxu0 0.0
        %320 = vmatpush1.msra.mxu0 0.0
        %321 = vmatprep.subr.mxu0 0.0
        %322 = vmatpush1.msra.mxu0 0.0
        %323 = vmatprep.subr.mxu0 0.0
        %324 = vmatpush1.msra.mxu0 0.0
        %325 = vmatprep.subr.mxu0 0.0
        %326 = vmatpush1.msra.mxu0 0.0
        %327 = vmatprep.subr.mxu0 0.0
        %328 = vmatpush1.msra.mxu0 0.0
        %329 = vmatprep.subr.mxu0 0.0
        %330 = vmatpush1.msra.mxu0 0.0
        %331 = vmatprep.subr.mxu0 0.0
        %332 = vmatpush1.msra.mxu0 0.0
        %333 = vmatprep.subr.mxu0 0.0
        %334 = vmatpush1.msra.mxu0 0.0
        %335 = vmatprep.subr.mxu0 0.0
        %336 = vmatpush1.msra.mxu0 0.0
        %337 = vmatprep.subr.mxu0 0.0
        %338 = vmatpush1.msra.mxu0 0.0
        %339 = vmatprep.subr.mxu0 0.0
        %340 = vmatpush1.msra.mxu0 0.0
        %341 = vmatprep.subr.mxu0 0.0
        %342 = vmatpush1.msra.mxu0 0.0
        %343 = vmatprep.subr.mxu0 0.0
        %344 = vmatpush1.msra.mxu0 0.0
        %345 = vmatprep.subr.mxu0 0.0
        %346 = vmatpush1.msra.mxu0 0.0
        %347 = vmatprep.mubr.f32.mxu0 0.0
        %348 = vmatmul.mubr.f32.gmra.mrb[0].mxu0 %v281
        %v349 = vpop.f32.mrb[0].mxu0
        %v350 = vadd.f32 %v277, %v349
        %v351 = vpop.f32.mrb[0].mxu0
        %352 = vdwg.mxu0
        %v353 = vmax.f32 %v350, 0.0
        %v354 = vld [vmem:[#allocation7] sm:$0xff]
        %v355 = vld [vmem:[#allocation7 + $0x8] sm:$0xff]
        %v356 = vld [vmem:[%s4] sm:$0x1]
        %v358 = vlaneseq
        %v359 = vshrl.u32 %v358, 7
        %v360 = vsub.s32 0, %v359
        %v361 = vrot.slane %v356, %v360
        %v364 = vsel %vm279, %v353, 0
        %366 = vmatprep.subr.mxu0 0.0
        %367 = vmatpush1.msra.mxu0 %v354
        %368 = vmatprep.subr.mxu0 0.0
        %369 = vmatpush1.msra.mxu0 %v355
        %370 = vmatprep.subr.mxu0 0.0
        %371 = vmatpush1.msra.mxu0 0.0
        %372 = vmatprep.subr.mxu0 0.0
        %373 = vmatpush1.msra.mxu0 0.0
        %374 = vmatprep.subr.mxu0 0.0
        %375 = vmatpush1.msra.mxu0 0.0
        %376 = vmatprep.subr.mxu0 0.0
        %377 = vmatpush1.msra.mxu0 0.0
        %378 = vmatprep.subr.mxu0 0.0
        %379 = vmatpush1.msra.mxu0 0.0
        %380 = vmatprep.subr.mxu0 0.0
        %381 = vmatpush1.msra.mxu0 0.0
        %382 = vmatprep.subr.mxu0 0.0
        %383 = vmatpush1.msra.mxu0 0.0
        %384 = vmatprep.subr.mxu0 0.0
        %385 = vmatpush1.msra.mxu0 0.0
        %386 = vmatprep.subr.mxu0 0.0
        %387 = vmatpush1.msra.mxu0 0.0
        %388 = vmatprep.subr.mxu0 0.0
        %389 = vmatpush1.msra.mxu0 0.0
        %390 = vmatprep.subr.mxu0 0.0
        %391 = vmatpush1.msra.mxu0 0.0
        %392 = vmatprep.subr.mxu0 0.0
        %393 = vmatpush1.msra.mxu0 0.0
        %394 = vmatprep.subr.mxu0 0.0
        %395 = vmatpush1.msra.mxu0 0.0
        %396 = vmatprep.subr.mxu0 0.0
        %397 = vmatpush1.msra.mxu0 0.0
        %398 = vmatprep.subr.mxu0 0.0
        %399 = vmatpush1.msra.mxu0 0.0
        %400 = vmatprep.subr.mxu0 0.0
        %401 = vmatpush1.msra.mxu0 0.0
        %402 = vmatprep.subr.mxu0 0.0
        %403 = vmatpush1.msra.mxu0 0.0
        %404 = vmatprep.subr.mxu0 0.0
        %405 = vmatpush1.msra.mxu0 0.0
        %406 = vmatprep.subr.mxu0 0.0
        %407 = vmatpush1.msra.mxu0 0.0
        %408 = vmatprep.subr.mxu0 0.0
        %409 = vmatpush1.msra.mxu0 0.0
        %410 = vmatprep.subr.mxu0 0.0
        %411 = vmatpush1.msra.mxu0 0.0
        %412 = vmatprep.subr.mxu0 0.0
        %413 = vmatpush1.msra.mxu0 0.0
        %414 = vmatprep.subr.mxu0 0.0
        %415 = vmatpush1.msra.mxu0 0.0
        %416 = vmatprep.subr.mxu0 0.0
        %417 = vmatpush1.msra.mxu0 0.0
        %418 = vmatprep.subr.mxu0 0.0
        %419 = vmatpush1.msra.mxu0 0.0
        %420 = vmatprep.subr.mxu0 0.0
        %421 = vmatpush1.msra.mxu0 0.0
        %422 = vmatprep.subr.mxu0 0.0
        %423 = vmatpush1.msra.mxu0 0.0
        %424 = vmatprep.subr.mxu0 0.0
        %425 = vmatpush1.msra.mxu0 0.0
        %426 = vmatprep.subr.mxu0 0.0
        %427 = vmatpush1.msra.mxu0 0.0
        %428 = vmatprep.subr.mxu0 0.0
        %429 = vmatpush1.msra.mxu0 0.0
        %430 = vmatprep.mubr.f32.mxu0 0.0
        %431 = vmatmul.mubr.f32.gmra.mrb[0].mxu0 %v364
        %v432 = vpop.f32.mrb[0].mxu0
        %v433 = vadd.f32 %v361, %v432
        %v434 = vpop.f32.mrb[0].mxu0
        %435 = vdwg.mxu0
        %436 = vst.msk [vmem:[%s268] sm:$0xff] %vm279, %v433
        %s437 = sand.u32 %s141, 1
        %s438 = scalar_lea.sflag [#allocation4], %s437
        %s439 = sand.u32 %s141, 1
        %s440 = smul.addr %s439, 8
        %s441 = scalar_lea.vmem [#allocation8], %s440
        // Predicated region
        $region53: #{tpu_custom_call.1} parent=39 // pred_check
          %p442 = pneg %p151
        $region54: #{tpu_custom_call.1} parent=39 // pred_check_branch
          %444 = sbr.rel (%p442) target = $region56
        $region55: #{tpu_custom_call.1} parent=39 // pred_region
          %s446 = ssub.s32 128, 128
          %447 = vsyncadd %s438, %s446
          %s448 = smul.addr %s23, 128
          %s449 = scalar_lea.hbm %s5, %s448
          %s451 = sshll.u32 %s441, 4
          %s452 = int_to_ptr.vmem [resolvable:$true] %s451
          %454 = dma.vmem_to_hbm [thread:$0]  %s452, 128, %s449, %s438
        $region56: #{tpu_custom_call.1} parent=39 // pred_fallthru
          _
      $region40: #{tpu_custom_call.1} parent=5 // pred_fallthru
        _
      %p455 = scmp.le.s32.totalorder 2, %s18
      // Predicated region
      $region57: #{tpu_custom_call.1} parent=5 // pred_check
        %p456 = pneg %p455
      $region58: #{tpu_custom_call.1} parent=5 // pred_check_branch
        %458 = sbr.rel (%p456) target = $region60
      $region59: #{tpu_custom_call.1} parent=5 // pred_region
        %s459 = ssub.s32 %s18, 2
        // Predicated region
        $region61: #{tpu_custom_call.1} parent=59 // pred_check
          %p460 = pneg %p157
        $region62: #{tpu_custom_call.1} parent=59 // pred_check_branch
          %462 = sbr.rel (%p460) target = $region64
        $region63: #{tpu_custom_call.1} parent=59 // pred_region
          %s463 = sand.u32 %s142, 1
          %s464 = scalar_lea.sflag [#allocation4], %s463
          %s465 = sand.u32 %s142, 1
          %s466 = smul.addr %s465, 8
          %s467 = scalar_lea.vmem [#allocation8], %s466
          %468 = dma.done %s464, 128
        $region64: #{tpu_custom_call.1} parent=59 // pred_fallthru
          _
      $region60: #{tpu_custom_call.1} parent=5 // pred_fallthru
        _
    $region6: #{tpu_custom_call.1} parent=1 // loop_footer
      %s22 = sadd.s32 1, %s18
    $region7: #{tpu_custom_call.1} parent=1 // loop_footer_branch
      %17 = sbr.rel target = $region3
    $region8: #{tpu_custom_call.1} parent=1 // loop_exit
      _
    %469 = vsyncpa [#allocation3], 1
    %s470 = scalar_lea.sflag [#allocation3], 1
    %471 = vsyncpa %s470, 1
    %472 = vsyncpa [#allocation6], 1
    %473 = vsyncpa [#allocation4], 1
    %s474 = scalar_lea.sflag [#allocation4], 1
    %475 = vsyncpa %s474, 1

// kernel: tpu_custom_call.1
$region0: #{tpu_custom_call.1}
  #allocation0 [shape = 'u32[]', space=smem, size = 0x4, offset = 0x4, fixed_abs, tag = 'smem constant byte address 0x4 - core index']
  #allocation1 [shape = 'u32[144,128]{1,0:T(1,128)}', space=vmem, size = 0x12000, scoped, tag = 'internal scratch']
  %s0 = inlined_call_operand.hbm [shape: f32[16,16], index: 0, kind: input, shape index: {}]
  %s1 = inlined_call_operand.hbm [shape: f32[16,16], index: 1, kind: input, shape index: {}]
  %s2 = inlined_call_operand.vmem [shape: f32[1,16], index: 2, kind: input, shape index: {}]
  %s3 = inlined_call_operand.hbm [shape: f32[16,16], index: 3, kind: input, shape index: {}]
  %s4 = inlined_call_operand.vmem [shape: f32[1,16], index: 4, kind: input, shape index: {}]
  %s5 = inlined_call_operand.hbm [shape: f32[16,16], index: 5, kind: output, shape index: {}]
  %s6 = sld [smem:[#allocation0]]
  $region65: #{tpu_custom_call.1} parent=0
    _
  %s8 = ssub.s32 1, %s6
  %s9 = scalar_select 0, %s8, %s6
  $region1: #{tpu_custom_call.1} parent=0
    #allocation2 [shape = 'u8[8192]{0}', space=vmem, size = 0x2000, scoped, tag = 'input window, operand 0']
    #allocation3 [shape = 's32[2]{0}', space=sflag, size = 0x8, scoped, tag = 'scoped memory for tpu_custom_call.1']
    #allocation4 [shape = 's32[2]{0}', space=sflag, size = 0x8, scoped, tag = 'scoped memory for tpu_custom_call.1']
    #allocation5 [shape = 'u8[8192]{0}', space=vmem, size = 0x2000, scoped, tag = 'input window, operand 1, single buffered']
    #allocation6 [shape = 's32[1]{0}', space=sflag, size = 0x4, scoped, tag = 'scoped memory for tpu_custom_call.1']
    #allocation7 [shape = 'u8[8192]{0}', space=vmem, size = 0x2000, scoped, tag = 'input window, operand 3, single buffered']
    #allocation8 [shape = 'u8[8192]{0}', space=vmem, size = 0x2000, scoped, tag = 'output window, operand 0']
    %10 = vsyncpa [#allocation3], 0
    %s11 = scalar_lea.sflag [#allocation3], 1
    %12 = vsyncpa %s11, 0
    %13 = vsyncpa [#allocation6], 0
    %14 = vsyncpa [#allocation4], 0
    %s15 = scalar_lea.sflag [#allocation4], 1
    %16 = vsyncpa %s15, 0
    loop: start=0, step=1, limit=4
    $region2: #{tpu_custom_call.1} parent=1 // loop_pre_header
      _
    $region3: #{tpu_custom_call.1} parent=1 // loop_header
      %s18 = sphi 0, %s22
      %p19 = scmp.ge.s32.totalorder %s18, 4
      %s28 = sphi 0, %s30
      %s31 = sphi 0, %s28
      %s32 = sphi 0, %s31
      %s48 = sphi 0, %s32
      %s52 = sphi 0, %s52
      %s54 = sphi 0, %s52
      %s55 = sphi 0, %s54
      %s69 = sphi 0, %s55
      %s73 = sphi 0, %s73
      %s75 = sphi 0, %s73
      %s76 = sphi 0, %s75
      %s90 = sphi 0, %s76
      %s94 = sphi 0, %s94
      %s96 = sphi 0, %s94
      %s97 = sphi 0, %s96
      %s111 = sphi 0, %s97
      %s115 = sphi 0, %s115
      %s117 = sphi 0, %s115
      %s118 = sphi 0, %s117
      %s132 = sphi 0, %s118
      %s138 = sphi 0, %s140
      %s141 = sphi 0, %s138
      %s142 = sphi 0, %s141
      %s158 = sphi 0, %s142
    $region4: #{tpu_custom_call.1} parent=1 // loop_header_branch
      %21 = sbr.rel (%p19) target = $region8
    $region5: #{tpu_custom_call.1} parent=1 // loop_body
      %s23 = ssub.s32 %s18, 1
      %s24 = ssub.s32 %s18, 2
      %s25 = sadd.s32 %s18, 1
      %s26 = ssub.s32 %s18, %s25
      %p27 = scmp.eq.s32.totalorder %s26, 0
      %s29 = sadd.s32 %s28, 1
      %s30 = scalar_select %p27, %s28, %s29
      %p33 = pneg %p27
      %p34 = scmp.eq.s32.totalorder %s18, 1
      %p35 = por %p33, %p34
      %p36 = scmp.ne.s32.totalorder %s28, %s31
      %p37 = scmp.eq.s32.totalorder %s18, 0
      %p38 = por %p36, %p37
      %p39 = scmp.ne.s32.totalorder %s28, %s31
      %p40 = scmp.eq.s32.totalorder %s23, 1
      %p41 = por %p39, %p40
      %p42 = scmp.ne.s32.totalorder %s31, %s32
      %p43 = scmp.eq.s32.totalorder %s23, 0
      %p44 = por %p42, %p43
      %p45 = scmp.ne.s32.totalorder %s31, %s32
      %p46 = scmp.eq.s32.totalorder %s24, 1
      %p47 = por %p45, %p46
      %p49 = scmp.ne.s32.totalorder %s32, %s48
      %p50 = scmp.eq.s32.totalorder %s24, 0
      %p51 = por %p49, %p50
      %s53 = sadd.s32 %s52, 1
      %p56 = scmp.eq.s32.totalorder %s18, 1
      %p57 = scmp.ne.s32.totalorder %s52, %s54
      %p58 = scmp.eq.s32.totalorder %s18, 0
      %p59 = por %p57, %p58
      %p60 = scmp.ne.s32.totalorder %s52, %s54
      %p61 = scmp.eq.s32.totalorder %s23, 1
      %p62 = por %p60, %p61
      %p63 = scmp.ne.s32.totalorder %s54, %s55
      %p64 = scmp.eq.s32.totalorder %s23, 0
      %p65 = por %p63, %p64
      %p66 = scmp.ne.s32.totalorder %s54, %s55
      %p67 = scmp.eq.s32.totalorder %s24, 1
      %p68 = por %p66, %p67
      %p70 = scmp.ne.s32.totalorder %s55, %s69
      %p71 = scmp.eq.s32.totalorder %s24, 0
      %p72 = por %p70, %p71
      %s74 = sadd.s32 %s73, 1
      %p77 = scmp.eq.s32.totalorder %s18, 1
      %p78 = scmp.ne.s32.totalorder %s73, %s75
      %p79 = scmp.eq.s32.totalorder %s18, 0
      %p80 = por %p78, %p79
      %p81 = scmp.ne.s32.totalorder %s73, %s75
      %p82 = scmp.eq.s32.totalorder %s23, 1
      %p83 = por %p81, %p82
      %p84 = scmp.ne.s32.totalorder %s75, %s76
      %p85 = scmp.eq.s32.totalorder %s23, 0
      %p86 = por %p84, %p85
      %p87 = scmp.ne.s32.totalorder %s75, %s76
      %p88 = scmp.eq.s32.totalorder %s24, 1
      %p89 = por %p87, %p88
      %p91 = scmp.ne.s32.totalorder %s76, %s90
      %p92 = scmp.eq.s32.totalorder %s24, 0
      %p93 = por %p91, %p92
      %s95 = sadd.s32 %s94, 1
      %p98 = scmp.eq.s32.totalorder %s18, 1
      %p99 = scmp.ne.s32.totalorder %s94, %s96
      %p100 = scmp.eq.s32.totalorder %s18, 0
      %p101 = por %p99, %p100
      %p102 = scmp.ne.s32.totalorder %s94, %s96
      %p103 = scmp.eq.s32.totalorder %s23, 1
      %p104 = por %p102, %p103
      %p105 = scmp.ne.s32.totalorder %s96, %s97
      %p106 = scmp.eq.s32.totalorder %s23, 0
      %p107 = por %p105, %p106
      %p108 = scmp.ne.s32.totalorder %s96, %s97
      %p109 = scmp.eq.s32.totalorder %s24, 1
      %p110 = por %p108, %p109
      %p112 = scmp.ne.s32.totalorder %s97, %s111
      %p113 = scmp.eq.s32.totalorder %s24, 0
      %p114 = por %p112, %p113
      %s116 = sadd.s32 %s115, 1
      %p119 = scmp.eq.s32.totalorder %s18, 1
      %p120 = scmp.ne.s32.totalorder %s115, %s117
      %p121 = scmp.eq.s32.totalorder %s18, 0
      %p122 = por %p120, %p121
      %p123 = scmp.ne.s32.totalorder %s115, %s117
      %p124 = scmp.eq.s32.totalorder %s23, 1
      %p125 = por %p123, %p124
      %p126 = scmp.ne.s32.totalorder %s117, %s118
      %p127 = scmp.eq.s32.totalorder %s23, 0
      %p128 = por %p126, %p127
      %p129 = scmp.ne.s32.totalorder %s117, %s118
      %p130 = scmp.eq.s32.totalorder %s24, 1
      %p131 = por %p129, %p130
      %p133 = scmp.ne.s32.totalorder %s118, %s132
      %p134 = scmp.eq.s32.totalorder %s24, 0
      %p135 = por %p133, %p134
      %s136 = ssub.s32 %s18, %s25
      %p137 = scmp.eq.s32.totalorder %s136, 0
      %s139 = sadd.s32 %s138, 1
      %s140 = scalar_select %p137, %s138, %s139
      %p143 = pneg %p137
      %p144 = scmp.eq.s32.totalorder %s18, 1
      %p145 = por %p143, %p144
      %p146 = scmp.ne.s32.totalorder %s138, %s141
      %p147 = scmp.eq.s32.totalorder %s18, 0
      %p148 = por %p146, %p147
      %p149 = scmp.ne.s32.totalorder %s138, %s141
      %p150 = scmp.eq.s32.totalorder %s23, 1
      %p151 = por %p149, %p150
      %p152 = scmp.ne.s32.totalorder %s141, %s142
      %p153 = scmp.eq.s32.totalorder %s23, 0
      %p154 = por %p152, %p153
      %p155 = scmp.ne.s32.totalorder %s141, %s142
      %p156 = scmp.eq.s32.totalorder %s24, 1
      %p157 = por %p155, %p156
      %p159 = scmp.ne.s32.totalorder %s142, %s158
      %p160 = scmp.eq.s32.totalorder %s24, 0
      %p161 = por %p159, %p160
      %p162 = scmp.le.s32.totalorder 1, %s18
      %p163 = scmp.lt.s32.totalorder %s18, 3
      %p164 = pnand %p162, %p163
      %p165 = pneg %p164
      // Predicated region
      $region9: #{tpu_custom_call.1} parent=5 // pred_check
        _
      $region10: #{tpu_custom_call.1} parent=5 // pred_check_branch
        %167 = sbr.rel (%p164) target = $region12
      $region11: #{tpu_custom_call.1} parent=5 // pred_region
        %s168 = ssub.s32 %s18, 1
        // Predicated region
        $region13: #{tpu_custom_call.1} parent=11 // pred_check
          %p169 = pneg %p65
        $region14: #{tpu_custom_call.1} parent=11 // pred_check_branch
          %171 = sbr.rel (%p169) target = $region16
        $region15: #{tpu_custom_call.1} parent=11 // pred_region
          %s173 = ssub.s32 256, 256
          %174 = vsyncadd [#allocation6], %s173
          %s175 = sshll.u32 [#allocation5], 4
          %s176 = int_to_ptr.vmem [resolvable:$true] %s175
          %181 = dma.hbm_to_vmem [thread:$0]  %s1, 256, %s176, [#allocation6], 128, 128, 8
        $region16: #{tpu_custom_call.1} parent=11 // pred_fallthru
          _
        // Predicated region
        $region17: #{tpu_custom_call.1} parent=11 // pred_check
          %p182 = pneg %p86
        $region18: #{tpu_custom_call.1} parent=11 // pred_check_branch
          %184 = sbr.rel (%p182) target = $region20
        $region19: #{tpu_custom_call.1} parent=11 // pred_region
          _
        $region20: #{tpu_custom_call.1} parent=11 // pred_fallthru
          _
        // Predicated region
        $region21: #{tpu_custom_call.1} parent=11 // pred_check
          %p185 = pneg %p107
        $region22: #{tpu_custom_call.1} parent=11 // pred_check_branch
          %187 = sbr.rel (%p185) target = $region24
        $region23: #{tpu_custom_call.1} parent=11 // pred_region
          %s189 = ssub.s32 256, 256
          %190 = vsyncadd [#allocation6], %s189
          %s191 = sshll.u32 [#allocation7], 4
          %s192 = int_to_ptr.vmem [resolvable:$true] %s191
          %197 = dma.hbm_to_vmem [thread:$0]  %s3, 256, %s192, [#allocation6], 128, 128, 8
        $region24: #{tpu_custom_call.1} parent=11 // pred_fallthru
          _
        // Predicated region
        $region25: #{tpu_custom_call.1} parent=11 // pred_check
          %p198 = pneg %p128
        $region26: #{tpu_custom_call.1} parent=11 // pred_check_branch
          %200 = sbr.rel (%p198) target = $region28
        $region27: #{tpu_custom_call.1} parent=11 // pred_region
          _
        $region28: #{tpu_custom_call.1} parent=11 // pred_fallthru
          _
      $region12: #{tpu_custom_call.1} parent=5 // pred_fallthru
        _
      %p201 = scmp.lt.s32.totalorder %s18, 2
      // Predicated region
      $region29: #{tpu_custom_call.1} parent=5 // pred_check
        %p202 = pneg %p201
      $region30: #{tpu_custom_call.1} parent=5 // pred_check_branch
        %204 = sbr.rel (%p202) target = $region32
      $region31: #{tpu_custom_call.1} parent=5 // pred_region
        // Predicated region
        $region33: #{tpu_custom_call.1} parent=31 // pred_check
          %p205 = pneg %p38
        $region34: #{tpu_custom_call.1} parent=31 // pred_check_branch
          %207 = sbr.rel (%p205) target = $region36
        $region35: #{tpu_custom_call.1} parent=31 // pred_region
          %s208 = sand.u32 %s28, 1
          %s209 = scalar_lea.sflag [#allocation3], %s208
          %s210 = sand.u32 %s28, 1
          %s211 = smul.addr %s210, 8
          %s212 = scalar_lea.vmem [#allocation2], %s211
          %s214 = ssub.s32 128, 128
          %215 = vsyncadd %s209, %s214
          %s216 = smul.addr %s18, 128
          %s217 = scalar_lea.hbm %s0, %s216
          %s219 = sshll.u32 %s212, 4
          %s220 = int_to_ptr.vmem [resolvable:$true] %s219
          %222 = dma.hbm_to_vmem [thread:$0]  %s217, 128, %s220, %s209
        $region36: #{tpu_custom_call.1} parent=31 // pred_fallthru
          _
      $region32: #{tpu_custom_call.1} parent=5 // pred_fallthru
        _
      %p223 = scmp.le.s32.totalorder 1, %s18
      %p224 = scmp.lt.s32.totalorder %s18, 3
      %p225 = pnand %p223, %p224
      %p226 = pneg %p225
      // Predicated region
      $region37: #{tpu_custom_call.1} parent=5 // pred_check
        _
      $region38: #{tpu_custom_call.1} parent=5 // pred_check_branch
        %228 = sbr.rel (%p225) target = $region40
      $region39: #{tpu_custom_call.1} parent=5 // pred_region
        %s229 = ssub.s32 %s18, 1
        %s230 = sand.u32 %s31, 1
        %s231 = scalar_lea.sflag [#allocation3], %s230
        %s232 = sand.u32 %s31, 1
        %s233 = smul.addr %s232, 8
        %s234 = scalar_lea.vmem [#allocation2], %s233
        // Predicated region
        $region41: #{tpu_custom_call.1} parent=39 // pred_check
          %p235 = pneg %p44
        $region42: #{tpu_custom_call.1} parent=39 // pred_check_branch
          %237 = sbr.rel (%p235) target = $region44
        $region43: #{tpu_custom_call.1} parent=39 // pred_region
          %238 = dma.done %s231, 128
        $region44: #{tpu_custom_call.1} parent=39 // pred_fallthru
          _
        // Predicated region
        $region45: #{tpu_custom_call.1} parent=39 // pred_check
          %p239 = pneg %p65
        $region46: #{tpu_custom_call.1} parent=39 // pred_check_branch
          %241 = sbr.rel (%p239) target = $region48
        $region47: #{tpu_custom_call.1} parent=39 // pred_region
          %242 = dma.done [#allocation6], 256
        $region48: #{tpu_custom_call.1} parent=39 // pred_fallthru
          _
        // Predicated region
        $region49: #{tpu_custom_call.1} parent=39 // pred_check
          %p243 = pneg %p107
        $region50: #{tpu_custom_call.1} parent=39 // pred_check_branch
          %245 = sbr.rel (%p243) target = $region52
        $region51: #{tpu_custom_call.1} parent=39 // pred_region
          %246 = dma.done [#allocation6], 256
        $region52: #{tpu_custom_call.1} parent=39 // pred_fallthru
          _
        %s247 = sand.u32 %s31, 1
        %s248 = scalar_lea.sflag [#allocation3], %s247
        %s249 = sand.u32 %s31, 1
        %s250 = smul.addr %s249, 8
        %s251 = scalar_lea.vmem [#allocation2], %s250
        %p252 = pneg %p44
        %p253 = pneg %p41
        %p254 = pneg %p65
        %p255 = pneg %p62
        %p256 = pneg %p86
        %p257 = pneg %p83
        %p258 = pneg %p107
        %p259 = pneg %p104
        %p260 = pneg %p128
        %p261 = pneg %p125
        %p262 = pneg %p154
        %p263 = pneg %p151
        %s264 = sand.u32 %s141, 1
        %s265 = scalar_lea.sflag [#allocation4], %s264
        %s266 = sand.u32 %s141, 1
        %s267 = smul.addr %s266, 8
        %s268 = scalar_lea.vmem [#allocation8], %s267
        %v269 = vld [vmem:[%s234] sm:$0xff]
        %v270 = vld [vmem:[#allocation5] sm:$0xff]
        %v271 = vld [vmem:[#allocation5 + $0x8] sm:$0xff]
        %v272 = vld [vmem:[%s2] sm:$0x1]
        %v274 = vlaneseq
        %v275 = vshrl.u32 %v274, 7
        %v276 = vsub.s32 0, %v275
        %v277 = vrot.slane %v272, %v276
        %vm279 = vcmask 130048
        %v281 = vsel %vm279, %v269, 0
        %283 = vmatprep.subr.mxu0 0.0
        %284 = vmatpush1.msra.mxu0 %v270
        %285 = vmatprep.subr.mxu0 0.0
        %286 = vmatpush1.msra.mxu0 %v271
        %287 = vmatprep.subr.mxu0 0.0
        %288 = vmatpush1.msra.mxu0 0.0
        %289 = vmatprep.subr.mxu0 0.0
        %290 = vmatpush1.msra.mxu0 0.0
        %291 = vmatprep.subr.mxu0 0.0
        %292 = vmatpush1.msra.mxu0 0.0
        %293 = vmatprep.subr.mxu0 0.0
        %294 = vmatpush1.msra.mxu0 0.0
        %295 = vmatprep.subr.mxu0 0.0
        %296 = vmatpush1.msra.mxu0 0.0
        %297 = vmatprep.subr.mxu0 0.0
        %298 = vmatpush1.msra.mxu0 0.0
        %299 = vmatprep.subr.mxu0 0.0
        %300 = vmatpush1.msra.mxu0 0.0
        %301 = vmatprep.subr.mxu0 0.0
        %302 = vmatpush1.msra.mxu0 0.0
        %303 = vmatprep.subr.mxu0 0.0
        %304 = vmatpush1.msra.mxu0 0.0
        %305 = vmatprep.subr.mxu0 0.0
        %306 = vmatpush1.msra.mxu0 0.0
        %307 = vmatprep.subr.mxu0 0.0
        %308 = vmatpush1.msra.mxu0 0.0
        %309 = vmatprep.subr.mxu0 0.0
        %310 = vmatpush1.msra.mxu0 0.0
        %311 = vmatprep.subr.mxu0 0.0
        %312 = vmatpush1.msra.mxu0 0.0
        %313 = vmatprep.subr.mxu0 0.0
        %314 = vmatpush1.msra.mxu0 0.0
        %315 = vmatprep.subr.mxu0 0.0
        %316 = vmatpush1.msra.mxu0 0.0
        %317 = vmatprep.subr.mxu0 0.0
        %318 = vmatpush1.msra.mxu0 0.0
        %319 = vmatprep.subr.mxu0 0.0
        %320 = vmatpush1.msra.mxu0 0.0
        %321 = vmatprep.subr.mxu0 0.0
        %322 = vmatpush1.msra.mxu0 0.0
        %323 = vmatprep.subr.mxu0 0.0
        %324 = vmatpush1.msra.mxu0 0.0
        %325 = vmatprep.subr.mxu0 0.0
        %326 = vmatpush1.msra.mxu0 0.0
        %327 = vmatprep.subr.mxu0 0.0
        %328 = vmatpush1.msra.mxu0 0.0
        %329 = vmatprep.subr.mxu0 0.0
        %330 = vmatpush1.msra.mxu0 0.0
        %331 = vmatprep.subr.mxu0 0.0
        %332 = vmatpush1.msra.mxu0 0.0
        %333 = vmatprep.subr.mxu0 0.0
        %334 = vmatpush1.msra.mxu0 0.0
        %335 = vmatprep.subr.mxu0 0.0
        %336 = vmatpush1.msra.mxu0 0.0
        %337 = vmatprep.subr.mxu0 0.0
        %338 = vmatpush1.msra.mxu0 0.0
        %339 = vmatprep.subr.mxu0 0.0
        %340 = vmatpush1.msra.mxu0 0.0
        %341 = vmatprep.subr.mxu0 0.0
        %342 = vmatpush1.msra.mxu0 0.0
        %343 = vmatprep.subr.mxu0 0.0
        %344 = vmatpush1.msra.mxu0 0.0
        %345 = vmatprep.subr.mxu0 0.0
        %346 = vmatpush1.msra.mxu0 0.0
        %347 = vmatprep.mubr.f32.mxu0 0.0
        %348 = vmatmul.mubr.f32.gmra.mrb[0].mxu0 %v281
        %v349 = vpop.f32.mrb[0].mxu0
        %v350 = vadd.f32 %v277, %v349
        %v351 = vpop.f32.mrb[0].mxu0
        %352 = vdwg.mxu0
        %v353 = vmax.f32 %v350, 0.0
        %v354 = vld [vmem:[#allocation7] sm:$0xff]
        %v355 = vld [vmem:[#allocation7 + $0x8] sm:$0xff]
        %v356 = vld [vmem:[%s4] sm:$0x1]
        %v358 = vlaneseq
        %v359 = vshrl.u32 %v358, 7
        %v360 = vsub.s32 0, %v359
        %v361 = vrot.slane %v356, %v360
        %v364 = vsel %vm279, %v353, 0
        %366 = vmatprep.subr.mxu0 0.0
        %367 = vmatpush1.msra.mxu0 %v354
        %368 = vmatprep.subr.mxu0 0.0
        %369 = vmatpush1.msra.mxu0 %v355
        %370 = vmatprep.subr.mxu0 0.0
        %371 = vmatpush1.msra.mxu0 0.0
        %372 = vmatprep.subr.mxu0 0.0
        %373 = vmatpush1.msra.mxu0 0.0
        %374 = vmatprep.subr.mxu0 0.0
        %375 = vmatpush1.msra.mxu0 0.0
        %376 = vmatprep.subr.mxu0 0.0
        %377 = vmatpush1.msra.mxu0 0.0
        %378 = vmatprep.subr.mxu0 0.0
        %379 = vmatpush1.msra.mxu0 0.0
        %380 = vmatprep.subr.mxu0 0.0
        %381 = vmatpush1.msra.mxu0 0.0
        %382 = vmatprep.subr.mxu0 0.0
        %383 = vmatpush1.msra.mxu0 0.0
        %384 = vmatprep.subr.mxu0 0.0
        %385 = vmatpush1.msra.mxu0 0.0
        %386 = vmatprep.subr.mxu0 0.0
        %387 = vmatpush1.msra.mxu0 0.0
        %388 = vmatprep.subr.mxu0 0.0
        %389 = vmatpush1.msra.mxu0 0.0
        %390 = vmatprep.subr.mxu0 0.0
        %391 = vmatpush1.msra.mxu0 0.0
        %392 = vmatprep.subr.mxu0 0.0
        %393 = vmatpush1.msra.mxu0 0.0
        %394 = vmatprep.subr.mxu0 0.0
        %395 = vmatpush1.msra.mxu0 0.0
        %396 = vmatprep.subr.mxu0 0.0
        %397 = vmatpush1.msra.mxu0 0.0
        %398 = vmatprep.subr.mxu0 0.0
        %399 = vmatpush1.msra.mxu0 0.0
        %400 = vmatprep.subr.mxu0 0.0
        %401 = vmatpush1.msra.mxu0 0.0
        %402 = vmatprep.subr.mxu0 0.0
        %403 = vmatpush1.msra.mxu0 0.0
        %404 = vmatprep.subr.mxu0 0.0
        %405 = vmatpush1.msra.mxu0 0.0
        %406 = vmatprep.subr.mxu0 0.0
        %407 = vmatpush1.msra.mxu0 0.0
        %408 = vmatprep.subr.mxu0 0.0
        %409 = vmatpush1.msra.mxu0 0.0
        %410 = vmatprep.subr.mxu0 0.0
        %411 = vmatpush1.msra.mxu0 0.0
        %412 = vmatprep.subr.mxu0 0.0
        %413 = vmatpush1.msra.mxu0 0.0
        %414 = vmatprep.subr.mxu0 0.0
        %415 = vmatpush1.msra.mxu0 0.0
        %416 = vmatprep.subr.mxu0 0.0
        %417 = vmatpush1.msra.mxu0 0.0
        %418 = vmatprep.subr.mxu0 0.0
        %419 = vmatpush1.msra.mxu0 0.0
        %420 = vmatprep.subr.mxu0 0.0
        %421 = vmatpush1.msra.mxu0 0.0
        %422 = vmatprep.subr.mxu0 0.0
        %423 = vmatpush1.msra.mxu0 0.0
        %424 = vmatprep.subr.mxu0 0.0
        %425 = vmatpush1.msra.mxu0 0.0
        %426 = vmatprep.subr.mxu0 0.0
        %427 = vmatpush1.msra.mxu0 0.0
        %428 = vmatprep.subr.mxu0 0.0
        %429 = vmatpush1.msra.mxu0 0.0
        %430 = vmatprep.mubr.f32.mxu0 0.0
        %431 = vmatmul.mubr.f32.gmra.mrb[0].mxu0 %v364
        %v432 = vpop.f32.mrb[0].mxu0
        %v433 = vadd.f32 %v361, %v432
        %v434 = vpop.f32.mrb[0].mxu0
        %435 = vdwg.mxu0
        %436 = vst.msk [vmem:[%s268] sm:$0xff] %vm279, %v433
        %s437 = sand.u32 %s141, 1
        %s438 = scalar_lea.sflag [#allocation4], %s437
        %s439 = sand.u32 %s141, 1
        %s440 = smul.addr %s439, 8
        %s441 = scalar_lea.vmem [#allocation8], %s440
        // Predicated region
        $region53: #{tpu_custom_call.1} parent=39 // pred_check
          %p442 = pneg %p151
        $region54: #{tpu_custom_call.1} parent=39 // pred_check_branch
          %444 = sbr.rel (%p442) target = $region56
        $region55: #{tpu_custom_call.1} parent=39 // pred_region
          %s446 = ssub.s32 128, 128
          %447 = vsyncadd %s438, %s446
          %s448 = smul.addr %s23, 128
          %s449 = scalar_lea.hbm %s5, %s448
          %s451 = sshll.u32 %s441, 4
          %s452 = int_to_ptr.vmem [resolvable:$true] %s451
          %454 = dma.vmem_to_hbm [thread:$0]  %s452, 128, %s449, %s438
        $region56: #{tpu_custom_call.1} parent=39 // pred_fallthru
          _
      $region40: #{tpu_custom_call.1} parent=5 // pred_fallthru
        _
      %p455 = scmp.le.s32.totalorder 2, %s18
      // Predicated region
      $region57: #{tpu_custom_call.1} parent=5 // pred_check
        %p456 = pneg %p455
      $region58: #{tpu_custom_call.1} parent=5 // pred_check_branch
        %458 = sbr.rel (%p456) target = $region60
      $region59: #{tpu_custom_call.1} parent=5 // pred_region
        %s459 = ssub.s32 %s18, 2
        // Predicated region
        $region61: #{tpu_custom_call.1} parent=59 // pred_check
          %p460 = pneg %p157
        $region62: #{tpu_custom_call.1} parent=59 // pred_check_branch
          %462 = sbr.rel (%p460) target = $region64
        $region63: #{tpu_custom_call.1} parent=59 // pred_region
          %s463 = sand.u32 %s142, 1
          %s464 = scalar_lea.sflag [#allocation4], %s463
          %s465 = sand.u32 %s142, 1
          %s466 = smul.addr %s465, 8
          %s467 = scalar_lea.vmem [#allocation8], %s466
          %468 = dma.done %s464, 128
        $region64: #{tpu_custom_call.1} parent=59 // pred_fallthru
          _
      $region60: #{tpu_custom_call.1} parent=5 // pred_fallthru
        _
    $region6: #{tpu_custom_call.1} parent=1 // loop_footer
      %s22 = sadd.s32 1, %s18
    $region7: #{tpu_custom_call.1} parent=1 // loop_footer_branch
      %17 = sbr.rel target = $region3
    $region8: #{tpu_custom_call.1} parent=1 // loop_exit
      _
    %469 = vsyncpa [#allocation3], 1
    %s470 = scalar_lea.sflag [#allocation3], 1
    %471 = vsyncpa %s470, 1
    %472 = vsyncpa [#allocation6], 1
    %473 = vsyncpa [#allocation4], 1
    %s474 = scalar_lea.sflag [#allocation4], 1
    %475 = vsyncpa %s474, 1

</llo_original>
